<compile_context>
chip_gen: v6e
topology: v6e:2x2x1
jax: 0.10.0
libtpu: 0.0.40
codegen_flags: <defaults>
</compile_context>

<pallas_src>
import math

import jax
import jax.numpy as jnp
from jax.experimental import pallas as pl
from jax.experimental.pallas import tpu as pltpu


# ----------------------------------------------------------------------------
# Kernels
# ----------------------------------------------------------------------------
def _agg_sum_kernel(a_ref, b_ref, o_ref):
    # a_ref, b_ref, o_ref: (1, C, L_tile) -- pure elementwise VPU add.
    o_ref[...] = a_ref[...] + b_ref[...]


def _agg_concat_conv1x1_kernel(a_ref, b_ref, wa_ref, wb_ref, bias_ref, o_ref):
    # a_ref, b_ref  : (1, C, L_tile)      streamed activations
    # wa_ref, wb_ref: (C_out, C)          resident weight halves
    # bias_ref      : (C_out, 1)          resident bias (f32)
    # o_ref         : (1, C_out, L_tile)
    #
    # conv1x1(cat([a, b], C)) == W[:, :C] @ a + W[:, C:] @ b + bias
    acc = jnp.dot(wa_ref[...], a_ref[0], preferred_element_type=jnp.float32)
    acc = acc + jnp.dot(wb_ref[...], b_ref[0], preferred_element_type=jnp.float32)
    o_ref[0] = (acc + bias_ref[...]).astype(o_ref.dtype)


# ----------------------------------------------------------------------------
# Wrapper
# ----------------------------------------------------------------------------
def _tile_plan(L, max_tile=2048):
    """Pick a lane-dense (multiple of 128) L tile and the padded L."""
    l128 = ((L + 127) // 128) * 128
    l_tile = min(l128, max_tile)
    n_l = (l128 + l_tile - 1) // l_tile
    return l_tile, n_l, n_l * l_tile


def _pad_last(x3, L_pad):
    L = x3.shape[-1]
    if L_pad == L:
        return x3
    return jnp.pad(x3, ((0, 0), (0, 0), (0, L_pad - L)))


def aggregation(a, b, *, mode, weight=None, bias=None, max_l_tile=2048):
    """Forward pass of the Aggregation module (NCHW in, NCHW out)."""
    assert a.shape == b.shape, (a.shape, b.shape)
    B, C, H, W = a.shape
    L = H * W
    l_tile, n_l, L_pad = _tile_plan(L, max_l_tile)

    a3 = _pad_last(a.reshape(B, C, L), L_pad)
    b3 = _pad_last(b.reshape(B, C, L), L_pad)

    cparams = pltpu.CompilerParams(
        dimension_semantics=("parallel", "parallel"),
        vmem_limit_bytes=32 * 1024 * 1024,  # safe on v5e/v6e and v7x (64 MiB phys)
    )

    if mode == "sum":
        # Identity fuse: just a + b.
        y3 = pl.pallas_call(
            _agg_sum_kernel,
            out_shape=jax.ShapeDtypeStruct((B, C, L_pad), a.dtype),
            grid=(B, n_l),
            in_specs=[
                pl.BlockSpec((1, C, l_tile), lambda n, l: (n, 0, l)),
                pl.BlockSpec((1, C, l_tile), lambda n, l: (n, 0, l)),
            ],
            out_specs=pl.BlockSpec((1, C, l_tile), lambda n, l: (n, 0, l)),
            compiler_params=cparams,
        )(a3, b3)
        return y3[:, :, :L].reshape(B, C, H, W)

    # mode == "concat": 1x1 conv on channel-concatenated input.
    assert weight is not None and bias is not None
    C_out = weight.shape[0]
    assert weight.shape == (C_out, 2 * C, 1, 1), weight.shape

    w2 = weight[:, :, 0, 0]                              # (C_out, 2C)
    wa = jnp.asarray(w2[:, :C], dtype=a.dtype)           # (C_out, C) half acting on a
    wb = jnp.asarray(w2[:, C:], dtype=a.dtype)           # (C_out, C) half acting on b
    b2 = bias.reshape(C_out, 1).astype(jnp.float32)      # broadcast along lanes

    y3 = pl.pallas_call(
        _agg_concat_conv1x1_kernel,
        out_shape=jax.ShapeDtypeStruct((B, C_out, L_pad), a.dtype),
        grid=(B, n_l),
        in_specs=[
            pl.BlockSpec((1, C, l_tile), lambda n, l: (n, 0, l)),
            pl.BlockSpec((1, C, l_tile), lambda n, l: (n, 0, l)),
            pl.BlockSpec((C_out, C), lambda n, l: (0, 0)),   # resident weight half
            pl.BlockSpec((C_out, C), lambda n, l: (0, 0)),   # resident weight half
            pl.BlockSpec((C_out, 1), lambda n, l: (0, 0)),   # resident bias
        ],
        out_specs=pl.BlockSpec((1, C_out, l_tile), lambda n, l: (n, 0, l)),
        compiler_params=cparams,
    )(a3, b3, wa, wb, b2)

    return y3[:, :, :L].reshape(B, C_out, H, W)


# ----------------------------------------------------------------------------
# Pure-JAX reference for correctness checking
# ----------------------------------------------------------------------------
def aggregation_reference(a, b, mode, weight=None, bias=None):
    if mode == "sum":
        return a + b
    x = jnp.concatenate([a, b], axis=1)
    y = jax.lax.conv_general_dilated(
        x, weight,
        window_strides=(1, 1),
        padding="VALID",
        dimension_numbers=("NCHW", "OIHW", "NCHW"),
    )
    return y + bias.reshape(1, -1, 1, 1)


if __name__ == "__main__":
    B, dim, H, W = 2, 4, 16, 16

    key = jax.random.PRNGKey(0)
    ka, kb, kw, kbias = jax.random.split(key, 4)
    a = jax.random.normal(ka, (B, dim, H, W), jnp.float32)
    b = jax.random.normal(kb, (B, dim, H, W), jnp.float32)

    # Conv2d(dim*2, dim, kernel_size=1) init (kaiming-uniform-ish bounds).
    fan_in = dim * 2
    bound = 1.0 / math.sqrt(fan_in)
    weight = jax.random.uniform(kw, (dim, dim * 2, 1, 1), jnp.float32, -bound, bound)
    bias = jax.random.uniform(kbias, (dim,), jnp.float32, -bound, bound)

    # --- 'sum' aggregation (fuse = Identity) --------------------------------
    y_sum = aggregation(a, b, mode="sum")
    y_sum = jax.block_until_ready(y_sum)
    ref_sum = aggregation_reference(a, b, "sum")
    assert y_sum.shape == ref_sum.shape, (y_sum.shape, ref_sum.shape)
    assert jnp.allclose(y_sum, ref_sum, atol=1e-6, rtol=1e-6), "sum mismatch"

    # --- 'concat' aggregation (fuse = Conv2d(2*dim, dim, 1)) ----------------
    y_cat = aggregation(a, b, mode="concat", weight=weight, bias=bias)
    y_cat = jax.block_until_ready(y_cat)
    ref_cat = aggregation_reference(a, b, "concat", weight, bias)
    assert y_cat.shape == ref_cat.shape, (y_cat.shape, ref_cat.shape)
    assert jnp.allclose(y_cat, ref_cat, atol=1e-5, rtol=1e-5), "concat mismatch"

    print("KERNEL_OK")
</pallas_src>

<mosaic_0001>
module attributes {stable_mosaic.version = 11 : i64} {
  func.func @_agg_sum_kernel(%arg0: i32, %arg1: i32, %arg2: memref<1x4x256xf32, #tpu.memory_space<vmem>>, %arg3: memref<1x4x256xf32, #tpu.memory_space<vmem>>, %arg4: memref<1x4x256xf32, #tpu.memory_space<vmem>>) attributes {dimension_semantics = [#tpu.dimension_semantics<parallel>, #tpu.dimension_semantics<parallel>], iteration_bounds = array<i64: 2, 1>, scalar_prefetch = 0 : i64, scratch_operands = 0 : i64, tpu.core_type = #tpu.core_type<tc>, window_params = [{transform_indices = @transform_0, window_bounds = array<i64: 1, 4, 256>}, {transform_indices = @transform_1, window_bounds = array<i64: 1, 4, 256>}, {transform_indices = @transform_2, window_bounds = array<i64: 1, 4, 256>}]} {
    %c0 = arith.constant 0 : index
    %c0_0 = arith.constant 0 : index
    %c0_1 = arith.constant 0 : index
    %0 = vector.load %arg2[%c0, %c0_0, %c0_1] : memref<1x4x256xf32, #tpu.memory_space<vmem>>, vector<1x4x256xf32>
    %c0_2 = arith.constant 0 : index
    %c0_3 = arith.constant 0 : index
    %c0_4 = arith.constant 0 : index
    %1 = vector.load %arg3[%c0_2, %c0_3, %c0_4] : memref<1x4x256xf32, #tpu.memory_space<vmem>>, vector<1x4x256xf32>
    %2 = arith.addf %0, %1 : vector<1x4x256xf32>
    %c0_5 = arith.constant 0 : index
    %c0_6 = arith.constant 0 : index
    %c0_7 = arith.constant 0 : index
    %3 = vector.load %arg4[%c0_5, %c0_6, %c0_7] : memref<1x4x256xf32, #tpu.memory_space<vmem>>, vector<1x4x256xf32>
    tpu.vector_store %arg4[%c0_5, %c0_6, %c0_7], %2 {strides = array<i32>} : memref<1x4x256xf32, #tpu.memory_space<vmem>>, vector<1x4x256xf32>,
    return
  }
  func.func @transform_0(%arg0: i32, %arg1: i32) -> (i32, i32, i32) {
    %c0_i32 = arith.constant 0 : i32
    %c0_i32_0 = arith.constant 0 : i32
    return %arg0, %c0_i32, %arg1 : i32, i32, i32
  }
  func.func @transform_1(%arg0: i32, %arg1: i32) -> (i32, i32, i32) {
    %c0_i32 = arith.constant 0 : i32
    %c0_i32_0 = arith.constant 0 : i32
    return %arg0, %c0_i32, %arg1 : i32, i32, i32
  }
  func.func @transform_2(%arg0: i32, %arg1: i32) -> (i32, i32, i32) {
    %c0_i32 = arith.constant 0 : i32
    %c0_i32_0 = arith.constant 0 : i32
    return %arg0, %c0_i32, %arg1 : i32, i32, i32
  }
}

</mosaic_0001>

<llo_original>
// kernel: tpu_custom_call.1
$region0: #{tpu_custom_call.1}
  #allocation0 [shape = 'u32[]', space=smem, size = 0x4, offset = 0x4, fixed_abs, tag = 'smem constant byte address 0x4 - core index']
  #allocation1 [shape = 'u32[144,128]{1,0:T(1,128)}', space=vmem, size = 0x12000, scoped, tag = 'internal scratch']
  %s0 = inlined_call_operand.hbm [shape: f32[2,4,256], index: 0, kind: input, shape index: {}]
  %s1 = inlined_call_operand.hbm [shape: f32[2,4,256], index: 1, kind: input, shape index: {}]
  %s2 = inlined_call_operand.hbm [shape: f32[2,4,256], index: 2, kind: output, shape index: {}]
  %s3 = sld [smem:[#allocation0]]
  $region49: #{tpu_custom_call.1} parent=0
    _
  %s5 = ssub.s32 1, %s3
  %s6 = scalar_select 0, %s5, %s3
  $region1: #{tpu_custom_call.1} parent=0
    #allocation2 [shape = 'u8[8192]{0}', space=vmem, size = 0x2000, scoped, tag = 'input window, operand 0']
    #allocation3 [shape = 's32[2]{0}', space=sflag, size = 0x8, scoped, tag = 'scoped memory for tpu_custom_call.1']
    #allocation4 [shape = 's32[2]{0}', space=sflag, size = 0x8, scoped, tag = 'scoped memory for tpu_custom_call.1']
    #allocation5 [shape = 'u8[8192]{0}', space=vmem, size = 0x2000, scoped, tag = 'input window, operand 1']
    #allocation6 [shape = 's32[2]{0}', space=sflag, size = 0x8, scoped, tag = 'scoped memory for tpu_custom_call.1']
    #allocation7 [shape = 'u8[8192]{0}', space=vmem, size = 0x2000, scoped, tag = 'output window, operand 0']
    %7 = vsyncpa [#allocation3], 0
    %s8 = scalar_lea.sflag [#allocation3], 1
    %9 = vsyncpa %s8, 0
    %10 = vsyncpa [#allocation6], 0
    %s11 = scalar_lea.sflag [#allocation6], 1
    %12 = vsyncpa %s11, 0
    %13 = vsyncpa [#allocation4], 0
    %s14 = scalar_lea.sflag [#allocation4], 1
    %15 = vsyncpa %s14, 0
    loop: start=0, step=1, limit=4
    $region2: #{tpu_custom_call.1} parent=1 // loop_pre_header
      _
    $region3: #{tpu_custom_call.1} parent=1 // loop_header
      %s17 = sphi 0, %s21
      %p18 = scmp.ge.s32.totalorder %s17, 4
      %s24 = sphi 0, %s36
      %s25 = sphi 0, %s32
      %s26 = sphi 0, %s24
      %s27 = sphi 0, %s25
      %s28 = sphi 0, %s26
      %s29 = sphi 0, %s27
      %s41 = sphi 0, %s43
      %s44 = sphi 0, %s41
      %s45 = sphi 0, %s44
      %s61 = sphi 0, %s45
      %s69 = sphi 0, %s71
      %s72 = sphi 0, %s69
      %s73 = sphi 0, %s72
      %s89 = sphi 0, %s73
      %s97 = sphi 0, %s99
      %s100 = sphi 0, %s97
      %s101 = sphi 0, %s100
      %s117 = sphi 0, %s101
    $region4: #{tpu_custom_call.1} parent=1 // loop_header_branch
      %20 = sbr.rel (%p18) target = $region8
    $region5: #{tpu_custom_call.1} parent=1 // loop_body
      %s22 = ssub.s32 %s17, 1
      %s23 = ssub.s32 %s17, 2
      %s30 = sadd.s32 1, %s25
      %p31 = scmp.ge.s32.totalorder %s30, 1
      %s32 = scalar_select %p31, 0, %s30
      %s33 = sadd.s32 1, %s24
      %s34 = scalar_select %p31, %s33, %s24
      %p35 = scmp.ge.s32.totalorder %s34, 2
      %s36 = scalar_select %p35, 0, %s34
      %s37 = ssub.s32 %s24, %s36
      %s38 = ssub.s32 %s25, %s32
      %s39 = sor.u32 %s37, %s38
      %p40 = scmp.eq.s32.totalorder %s39, 0
      %s42 = sadd.s32 %s41, 1
      %s43 = scalar_select %p40, %s41, %s42
      %p46 = pneg %p40
      %p47 = scmp.eq.s32.totalorder %s17, 1
      %p48 = por %p46, %p47
      %p49 = scmp.ne.s32.totalorder %s41, %s44
      %p50 = scmp.eq.s32.totalorder %s17, 0
      %p51 = por %p49, %p50
      %p52 = scmp.ne.s32.totalorder %s41, %s44
      %p53 = scmp.eq.s32.totalorder %s22, 1
      %p54 = por %p52, %p53
      %p55 = scmp.ne.s32.totalorder %s44, %s45
      %p56 = scmp.eq.s32.totalorder %s22, 0
      %p57 = por %p55, %p56
      %p58 = scmp.ne.s32.totalorder %s44, %s45
      %p59 = scmp.eq.s32.totalorder %s23, 1
      %p60 = por %p58, %p59
      %p62 = scmp.ne.s32.totalorder %s45, %s61
      %p63 = scmp.eq.s32.totalorder %s23, 0
      %p64 = por %p62, %p63
      %s65 = ssub.s32 %s24, %s36
      %s66 = ssub.s32 %s25, %s32
      %s67 = sor.u32 %s65, %s66
      %p68 = scmp.eq.s32.totalorder %s67, 0
      %s70 = sadd.s32 %s69, 1
      %s71 = scalar_select %p68, %s69, %s70
      %p74 = pneg %p68
      %p75 = scmp.eq.s32.totalorder %s17, 1
      %p76 = por %p74, %p75
      %p77 = scmp.ne.s32.totalorder %s69, %s72
      %p78 = scmp.eq.s32.totalorder %s17, 0
      %p79 = por %p77, %p78
      %p80 = scmp.ne.s32.totalorder %s69, %s72
      %p81 = scmp.eq.s32.totalorder %s22, 1
      %p82 = por %p80, %p81
      %p83 = scmp.ne.s32.totalorder %s72, %s73
      %p84 = scmp.eq.s32.totalorder %s22, 0
      %p85 = por %p83, %p84
      %p86 = scmp.ne.s32.totalorder %s72, %s73
      %p87 = scmp.eq.s32.totalorder %s23, 1
      %p88 = por %p86, %p87
      %p90 = scmp.ne.s32.totalorder %s73, %s89
      %p91 = scmp.eq.s32.totalorder %s23, 0
      %p92 = por %p90, %p91
      %s93 = ssub.s32 %s24, %s36
      %s94 = ssub.s32 %s25, %s32
      %s95 = sor.u32 %s93, %s94
      %p96 = scmp.eq.s32.totalorder %s95, 0
      %s98 = sadd.s32 %s97, 1
      %s99 = scalar_select %p96, %s97, %s98
      %p102 = pneg %p96
      %p103 = scmp.eq.s32.totalorder %s17, 1
      %p104 = por %p102, %p103
      %p105 = scmp.ne.s32.totalorder %s97, %s100
      %p106 = scmp.eq.s32.totalorder %s17, 0
      %p107 = por %p105, %p106
      %p108 = scmp.ne.s32.totalorder %s97, %s100
      %p109 = scmp.eq.s32.totalorder %s22, 1
      %p110 = por %p108, %p109
      %p111 = scmp.ne.s32.totalorder %s100, %s101
      %p112 = scmp.eq.s32.totalorder %s22, 0
      %p113 = por %p111, %p112
      %p114 = scmp.ne.s32.totalorder %s100, %s101
      %p115 = scmp.eq.s32.totalorder %s23, 1
      %p116 = por %p114, %p115
      %p118 = scmp.ne.s32.totalorder %s101, %s117
      %p119 = scmp.eq.s32.totalorder %s23, 0
      %p120 = por %p118, %p119
      %p121 = scmp.le.s32.totalorder 1, %s17
      %p122 = scmp.lt.s32.totalorder %s17, 3
      %p123 = pnand %p121, %p122
      %p124 = pneg %p123
      // Predicated region
      $region9: #{tpu_custom_call.1} parent=5 // pred_check
        _
      $region10: #{tpu_custom_call.1} parent=5 // pred_check_branch
        %126 = sbr.rel (%p123) target = $region12
      $region11: #{tpu_custom_call.1} parent=5 // pred_region
        %s127 = ssub.s32 %s17, 1
      $region12: #{tpu_custom_call.1} parent=5 // pred_fallthru
        _
      %p128 = scmp.lt.s32.totalorder %s17, 2
      // Predicated region
      $region13: #{tpu_custom_call.1} parent=5 // pred_check
        %p129 = pneg %p128
      $region14: #{tpu_custom_call.1} parent=5 // pred_check_branch
        %131 = sbr.rel (%p129) target = $region16
      $region15: #{tpu_custom_call.1} parent=5 // pred_region
        // Predicated region
        $region17: #{tpu_custom_call.1} parent=15 // pred_check
          %p132 = pneg %p51
        $region18: #{tpu_custom_call.1} parent=15 // pred_check_branch
          %134 = sbr.rel (%p132) target = $region20
        $region19: #{tpu_custom_call.1} parent=15 // pred_region
          %s135 = sand.u32 %s41, 1
          %s136 = scalar_lea.sflag [#allocation3], %s135
          %s137 = sand.u32 %s41, 1
          %s138 = smul.addr %s137, 8
          %s139 = scalar_lea.vmem [#allocation2], %s138
          %s140 = smul.u32 2, %s25
          %s142 = ssub.s32 128, 128
          %143 = vsyncadd %s136, %s142
          %s144 = smul.addr %s24, 2
          %s145 = sadd.s32 %s140, %s144
          %s146 = smul.addr %s145, 64
          %s147 = scalar_lea.hbm %s0, %s146
          %s149 = sshll.u32 %s139, 4
          %s150 = int_to_ptr.vmem [resolvable:$true] %s149
          %152 = dma.hbm_to_vmem [thread:$0]  %s147, 128, %s150, %s136
        $region20: #{tpu_custom_call.1} parent=15 // pred_fallthru
          _
        // Predicated region
        $region21: #{tpu_custom_call.1} parent=15 // pred_check
          %p153 = pneg %p79
        $region22: #{tpu_custom_call.1} parent=15 // pred_check_branch
          %155 = sbr.rel (%p153) target = $region24
        $region23: #{tpu_custom_call.1} parent=15 // pred_region
          %s156 = sand.u32 %s69, 1
          %s157 = scalar_lea.sflag [#allocation6], %s156
          %s158 = sand.u32 %s69, 1
          %s159 = smul.addr %s158, 8
          %s160 = scalar_lea.vmem [#allocation5], %s159
          %s161 = smul.u32 2, %s25
          %s163 = ssub.s32 128, 128
          %164 = vsyncadd %s157, %s163
          %s165 = smul.addr %s24, 2
          %s166 = sadd.s32 %s161, %s165
          %s167 = smul.addr %s166, 64
          %s168 = scalar_lea.hbm %s1, %s167
          %s170 = sshll.u32 %s160, 4
          %s171 = int_to_ptr.vmem [resolvable:$true] %s170
          %173 = dma.hbm_to_vmem [thread:$0]  %s168, 128, %s171, %s157
        $region24: #{tpu_custom_call.1} parent=15 // pred_fallthru
          _
      $region16: #{tpu_custom_call.1} parent=5 // pred_fallthru
        _
      %p174 = scmp.le.s32.totalorder 1, %s17
      %p175 = scmp.lt.s32.totalorder %s17, 3
      %p176 = pnand %p174, %p175
      %p177 = pneg %p176
      // Predicated region
      $region25: #{tpu_custom_call.1} parent=5 // pred_check
        _
      $region26: #{tpu_custom_call.1} parent=5 // pred_check_branch
        %179 = sbr.rel (%p176) target = $region28
      $region27: #{tpu_custom_call.1} parent=5 // pred_region
        %s180 = ssub.s32 %s17, 1
        %s181 = sand.u32 %s44, 1
        %s182 = scalar_lea.sflag [#allocation3], %s181
        %s183 = sand.u32 %s44, 1
        %s184 = smul.addr %s183, 8
        %s185 = scalar_lea.vmem [#allocation2], %s184
        // Predicated region
        $region29: #{tpu_custom_call.1} parent=27 // pred_check
          %p186 = pneg %p57
        $region30: #{tpu_custom_call.1} parent=27 // pred_check_branch
          %188 = sbr.rel (%p186) target = $region32
        $region31: #{tpu_custom_call.1} parent=27 // pred_region
          %189 = dma.done %s182, 128
        $region32: #{tpu_custom_call.1} parent=27 // pred_fallthru
          _
        %s190 = sand.u32 %s72, 1
        %s191 = scalar_lea.sflag [#allocation6], %s190
        %s192 = sand.u32 %s72, 1
        %s193 = smul.addr %s192, 8
        %s194 = scalar_lea.vmem [#allocation5], %s193
        // Predicated region
        $region33: #{tpu_custom_call.1} parent=27 // pred_check
          %p195 = pneg %p85
        $region34: #{tpu_custom_call.1} parent=27 // pred_check_branch
          %197 = sbr.rel (%p195) target = $region36
        $region35: #{tpu_custom_call.1} parent=27 // pred_region
          %198 = dma.done %s191, 128
        $region36: #{tpu_custom_call.1} parent=27 // pred_fallthru
          _
        %s199 = sand.u32 %s44, 1
        %s200 = scalar_lea.sflag [#allocation3], %s199
        %s201 = sand.u32 %s44, 1
        %s202 = smul.addr %s201, 8
        %s203 = scalar_lea.vmem [#allocation2], %s202
        %p204 = pneg %p57
        %p205 = pneg %p54
        %s206 = sand.u32 %s72, 1
        %s207 = scalar_lea.sflag [#allocation6], %s206
        %s208 = sand.u32 %s72, 1
        %s209 = smul.addr %s208, 8
        %s210 = scalar_lea.vmem [#allocation5], %s209
        %p211 = pneg %p85
        %p212 = pneg %p82
        %p213 = pneg %p113
        %p214 = pneg %p110
        %s215 = sand.u32 %s100, 1
        %s216 = scalar_lea.sflag [#allocation4], %s215
        %s217 = sand.u32 %s100, 1
        %s218 = smul.addr %s217, 8
        %s219 = scalar_lea.vmem [#allocation7], %s218
        %s220 = smul.u32 2, %s27
        %s221 = smul.u32 2, %s27
        %s222 = smul.u32 2, %s27
        %v223 = vld [vmem:[%s185] sm:$0xff]
        %v224 = vld [vmem:[%s194] sm:$0xff]
        %v225 = vadd.f32 %v223, %v224
        %226 = vst [vmem:[%s219] sm:$0xff] %v225
        %s227 = sand.u32 %s100, 1
        %s228 = scalar_lea.sflag [#allocation4], %s227
        %s229 = sand.u32 %s100, 1
        %s230 = smul.addr %s229, 8
        %s231 = scalar_lea.vmem [#allocation7], %s230
        // Predicated region
        $region37: #{tpu_custom_call.1} parent=27 // pred_check
          %p232 = pneg %p110
        $region38: #{tpu_custom_call.1} parent=27 // pred_check_branch
          %234 = sbr.rel (%p232) target = $region40
        $region39: #{tpu_custom_call.1} parent=27 // pred_region
          %s235 = smul.u32 2, %s27
          %s237 = ssub.s32 128, 128
          %238 = vsyncadd %s228, %s237
          %s239 = smul.addr %s26, 2
          %s240 = sadd.s32 %s235, %s239
          %s241 = smul.addr %s240, 64
          %s242 = scalar_lea.hbm %s2, %s241
          %s244 = sshll.u32 %s231, 4
          %s245 = int_to_ptr.vmem [resolvable:$true] %s244
          %247 = dma.vmem_to_hbm [thread:$0]  %s245, 128, %s242, %s228
        $region40: #{tpu_custom_call.1} parent=27 // pred_fallthru
          _
      $region28: #{tpu_custom_call.1} parent=5 // pred_fallthru
        _
      %p248 = scmp.le.s32.totalorder 2, %s17
      // Predicated region
      $region41: #{tpu_custom_call.1} parent=5 // pred_check
        %p249 = pneg %p248
      $region42: #{tpu_custom_call.1} parent=5 // pred_check_branch
        %251 = sbr.rel (%p249) target = $region44
      $region43: #{tpu_custom_call.1} parent=5 // pred_region
        %s252 = ssub.s32 %s17, 2
        // Predicated region
        $region45: #{tpu_custom_call.1} parent=43 // pred_check
          %p253 = pneg %p116
        $region46: #{tpu_custom_call.1} parent=43 // pred_check_branch
          %255 = sbr.rel (%p253) target = $region48
        $region47: #{tpu_custom_call.1} parent=43 // pred_region
          %s256 = sand.u32 %s101, 1
          %s257 = scalar_lea.sflag [#allocation4], %s256
          %s258 = sand.u32 %s101, 1
          %s259 = smul.addr %s258, 8
          %s260 = scalar_lea.vmem [#allocation7], %s259
          %261 = dma.done %s257, 128
        $region48: #{tpu_custom_call.1} parent=43 // pred_fallthru
          _
      $region44: #{tpu_custom_call.1} parent=5 // pred_fallthru
        _
    $region6: #{tpu_custom_call.1} parent=1 // loop_footer
      %s21 = sadd.s32 1, %s17
    $region7: #{tpu_custom_call.1} parent=1 // loop_footer_branch
      %16 = sbr.rel target = $region3
    $region8: #{tpu_custom_call.1} parent=1 // loop_exit
      _
    %262 = vsyncpa [#allocation3], 1
    %s263 = scalar_lea.sflag [#allocation3], 1
    %264 = vsyncpa %s263, 1
    %265 = vsyncpa [#allocation6], 1
    %s266 = scalar_lea.sflag [#allocation6], 1
    %267 = vsyncpa %s266, 1
    %268 = vsyncpa [#allocation4], 1
    %s269 = scalar_lea.sflag [#allocation4], 1
    %270 = vsyncpa %s269, 1

</llo_original>
